<compile_context>
chip_gen: v7x
topology: tpu7x:2x2x1
jax: 0.10.0
libtpu: 0.0.40
codegen_flags: <defaults>
</compile_context>

<pallas_src>
import math

import jax
import jax.numpy as jnp
from jax.experimental import pallas as pl
from jax.experimental.pallas import tpu as pltpu


def deepset2_kernel(xt_ref, w1_ref, b1_ref, w2_ref, b2_ref, wv_ref, bv_ref,
                    o_ref):
    """One batch tile of tb set elements, activations feature-major.

    xt_ref : [N, S, tb]  bf16  per-agent transposed x tile (lanes = batch rows)
    w1_ref : [H, S]      bf16  nn.Linear weight in [out, in] form
    b1_ref : [H, 1]      f32
    w2_ref : [H, H]      bf16  pre-scaled by 1/sqrt(N)
    b2_ref : [H, 1]      f32   pre-scaled by 1/sqrt(N)
    wv_ref : [1, H]      bf16  pre-scaled by 1/N
    bv_ref : [1, 1]      f32   pre-scaled by 1/N (SMEM scalar)
    o_ref  : [1, tb]     f32   lane-dense row of V values for this tile
    """
    n_agents = xt_ref.shape[0]

    # Layer 1 + set-sum: per-agent accumulation (unrolled; N is tiny).
    # h1s = sum_n relu(W1 @ x_n^T + b1)                       -> [H, tb] f32
    h1s = None
    for n in range(n_agents):
        h = jnp.dot(w1_ref[...], xt_ref[n],
                    preferred_element_type=jnp.float32)
        h = jnp.maximum(h + b1_ref[...], 0.0)
        h1s = h if h1s is None else h1s + h

    # Layer 2 (1/sqrt(N) already folded into W2/b2).          -> [H, tb] f32
    h2 = jnp.dot(w2_ref[...], h1s.astype(w2_ref.dtype),
                 preferred_element_type=jnp.float32)
    h2 = jnp.maximum(h2 + b2_ref[...], 0.0)

    # Value head (1/N already folded into Wv/bv).             -> [1, tb] f32
    v = jnp.dot(wv_ref[...], h2.astype(wv_ref.dtype),
                preferred_element_type=jnp.float32)
    v = v + bv_ref[0, 0]
    o_ref[...] = v.astype(o_ref.dtype)


def _default_batch_tile(batch):
    # Aim for >=2 tiles when the batch allows it (v7x megacore sharding of the
    # "parallel" grid axis), each tile a multiple of 128 lanes, capped at 2048
    # to keep the x double-buffer modest while amortizing per-step overhead.
    half = -(-batch // 2)
    tb = -(-half // 128) * 128
    return max(128, min(tb, 2048))


def prepare_params(params, n_agents):
    """Fold the 1/sqrt(N) and 1/N scales once; cast matmul weights to bf16."""
    s2 = 1.0 / math.sqrt(n_agents)
    sv = 1.0 / n_agents
    return {
        "w1": params["w1"].astype(jnp.bfloat16),                       # [H, S]
        "b1": params["b1"].reshape(-1, 1).astype(jnp.float32),         # [H, 1]
        "w2": (params["w2"] * s2).astype(jnp.bfloat16),                # [H, H]
        "b2": (params["b2"] * s2).reshape(-1, 1).astype(jnp.float32),  # [H, 1]
        "wv": (params["wv"] * sv).astype(jnp.bfloat16),                # [1, H]
        "bv": (params["bv"] * sv).reshape(1, 1).astype(jnp.float32),   # [1, 1]
    }


def deepset2_forward(x, prepared, *, tb=None):
    # TODO(synk): the use_agent_id=True branch (agent-attribute concat) is not
    # implemented; this covers the module's default use_agent_id=False forward.
    B, N, S = x.shape
    H = prepared["w1"].shape[0]

    if tb is None:
        tb = _default_batch_tile(B)
    grid_b = -(-B // tb)
    Bp = grid_b * tb

    # Layout plumbing stays in the wrapper.  Cast to bf16 BEFORE padding /
    # relayout so the small transpose pass moves half the bytes; the kernel
    # then only sees (8,128)-aligned, lane-dense blocks with the batch rows on
    # the lane axis and one leading per-agent axis.
    xb = x.astype(jnp.bfloat16)
    if Bp != B:
        xb = jnp.pad(xb, ((0, Bp - B), (0, 0), (0, 0)))
    xt = jnp.transpose(xb, (1, 2, 0))                     # [N, S, Bp]

    cost = pl.CostEstimate(
        flops=(2 * H * S * Bp * N          # layer 1 (per-agent)
               + 2 * H * H * Bp            # layer 2
               + 2 * H * Bp),              # value head
        transcendentals=0,
        bytes_accessed=(2 * S * Bp * N                    # x (bf16)
                        + 2 * (H * S + H * H + H)         # weights (bf16)
                        + 4 * (2 * H + 1)                 # biases (f32)
                        + 4 * Bp),                        # output (f32)
    )

    out = pl.pallas_call(
        deepset2_kernel,
        out_shape=jax.ShapeDtypeStruct((grid_b, tb), jnp.float32),
        grid_spec=pltpu.PrefetchScalarGridSpec(
            num_scalar_prefetch=0,
            grid=(grid_b,),
            in_specs=[
                pl.BlockSpec((N, S, tb), lambda i: (0, 0, i)),      # x tile
                pl.BlockSpec((H, S), lambda i: (0, 0)),             # W1 (resident)
                pl.BlockSpec((H, 1), lambda i: (0, 0)),             # b1
                pl.BlockSpec((H, H), lambda i: (0, 0)),             # W2 (scaled)
                pl.BlockSpec((H, 1), lambda i: (0, 0)),             # b2 (scaled)
                pl.BlockSpec((1, H), lambda i: (0, 0)),             # Wv (scaled)
                pl.BlockSpec(memory_space=pltpu.MemorySpace.SMEM),  # bv scalar
            ],
            out_specs=pl.BlockSpec((1, tb), lambda i: (i, 0)),
        ),
        compiler_params=pltpu.CompilerParams(
            dimension_semantics=("parallel",)),
        cost_estimate=cost,
    )(xt, prepared["w1"], prepared["b1"], prepared["w2"], prepared["b2"],
      prepared["wv"], prepared["bv"])

    # Lane-dense [grid_b, tb] -> [B, 1]
    return out.reshape(Bp)[:B].reshape(B, 1)


def deepset2_reference(x, params):
    """Pure-JAX f32 reference mirroring the PyTorch forward."""
    N = x.shape[1]
    h1 = jax.nn.relu(jnp.einsum("bns,hs->bnh", x, params["w1"]) + params["b1"])
    h1_summed = jnp.sum(h1, axis=1)
    h1_summed = h1_summed @ params["w2"].T + params["b2"]
    h1_summed = h1_summed / math.sqrt(N)
    h2 = jax.nn.relu(h1_summed)
    v = h2 @ params["wv"].T + params["bv"]
    return v / N


def init_params(key, sa_dim, hidden_size):
    """Deterministic synthetic init matching nn.Linear shapes (W: [out, in])."""
    k1, k2, k3, k4, k5, k6 = jax.random.split(key, 6)

    def lin(kw, kb, fan_in, fan_out):
        bound = 1.0 / math.sqrt(fan_in)
        w = jax.random.uniform(kw, (fan_out, fan_in), jnp.float32, -bound, bound)
        b = jax.random.uniform(kb, (fan_out,), jnp.float32, -bound, bound)
        return w, b

    w1, b1 = lin(k1, k2, sa_dim, hidden_size)
    w2, b2 = lin(k3, k4, hidden_size, hidden_size)
    wv, bv = lin(k5, k6, hidden_size, 1)
    # DeepSet2.__init__ scales the V layer by 0.1
    wv = wv * 0.1
    bv = bv * 0.1
    return {"w1": w1, "b1": b1, "w2": w2, "b2": b2, "wv": wv, "bv": bv}


if __name__ == "__main__":
    batch, n_agents, sa_dim, hidden = 2, 4, 8, 32

    key = jax.random.PRNGKey(0)
    kx, kp = jax.random.split(key)
    x = jax.random.normal(kx, (batch, n_agents, sa_dim), jnp.float32)
    params = init_params(kp, sa_dim, hidden)
    prepared = prepare_params(params, n_agents)

    forward = jax.jit(deepset2_forward)
    out = jax.block_until_ready(forward(x, prepared))

    ref = deepset2_reference(x, params)
    assert out.shape == (batch, 1)
    # bf16 matmul operands: tolerance relaxed from the old f32-only 1e-5.
    assert jnp.allclose(out, ref, atol=1e-2, rtol=1e-2), (out, ref)

    print("KERNEL_OK")
</pallas_src>

<mosaic_0001>
module attributes {stable_mosaic.version = 11 : i64} {
  func.func @deepset2_kernel(%arg0: i32, %arg1: memref<4x8x128xbf16, #tpu.memory_space<vmem>>, %arg2: memref<32x8xbf16, #tpu.memory_space<vmem>>, %arg3: memref<32x1xf32, #tpu.memory_space<vmem>>, %arg4: memref<32x32xbf16, #tpu.memory_space<vmem>>, %arg5: memref<32x1xf32, #tpu.memory_space<vmem>>, %arg6: memref<1x32xbf16, #tpu.memory_space<vmem>>, %arg7: memref<1x1xf32, #tpu.memory_space<smem>>, %arg8: memref<1x128xf32, #tpu.memory_space<vmem>>) attributes {dimension_semantics = [#tpu.dimension_semantics<parallel>], iteration_bounds = array<i64: 1>, scalar_prefetch = 0 : i64, scratch_operands = 0 : i64, tpu.core_type = #tpu.core_type<tc>, window_params = [{transform_indices = @transform_0, window_bounds = array<i64: 4, 8, 128>}, {pipeline_mode = #tpu.pipeline_mode<synchronous>, transform_indices = @transform_1, window_bounds = array<i64: 32, 8>}, {pipeline_mode = #tpu.pipeline_mode<synchronous>, transform_indices = @transform_2, window_bounds = array<i64: 32, 1>}, {pipeline_mode = #tpu.pipeline_mode<synchronous>, transform_indices = @transform_3, window_bounds = array<i64: 32, 32>}, {pipeline_mode = #tpu.pipeline_mode<synchronous>, transform_indices = @transform_4, window_bounds = array<i64: 32, 1>}, {pipeline_mode = #tpu.pipeline_mode<synchronous>, transform_indices = @transform_5, window_bounds = array<i64: 1, 32>}, {transform_indices = @transform_6, window_bounds = array<i64: 1, 1>}, {transform_indices = @transform_7, window_bounds = array<i64: 1, 128>}]} {
    %c0 = arith.constant 0 : index
    %c0_0 = arith.constant 0 : index
    %0 = vector.load %arg2[%c0, %c0_0] : memref<32x8xbf16, #tpu.memory_space<vmem>>, vector<32x8xbf16>
    %c0_1 = arith.constant 0 : index
    %c0_2 = arith.constant 0 : index
    %c0_3 = arith.constant 0 : index
    %1 = vector.load %arg1[%c0_1, %c0_2, %c0_3] : memref<4x8x128xbf16, #tpu.memory_space<vmem>>, vector<1x8x128xbf16>
    %2 = vector.shape_cast %1 : vector<1x8x128xbf16> to vector<8x128xbf16>
    %cst = arith.constant dense<0.000000e+00> : vector<32x128xf32>
    %3 = tpu.matmul %0, %2, %cst {dimension_numbers = #tpu.dot_dimension_numbers<[1], [0], [0], [1], [0, 0, 1, 1], [], []>} : vector<32x8xbf16>, vector<8x128xbf16>, vector<32x128xf32> -> vector<32x128xf32>
    %c0_4 = arith.constant 0 : index
    %c0_5 = arith.constant 0 : index
    %4 = vector.load %arg3[%c0_4, %c0_5] : memref<32x1xf32, #tpu.memory_space<vmem>>, vector<32x1xf32>
    %5 = vector.broadcast %4 : vector<32x1xf32> to vector<32x128xf32>
    %6 = arith.addf %3, %5 : vector<32x128xf32>
    %cst_6 = arith.constant 0.000000e+00 : f32
    %7 = vector.broadcast %cst_6 : f32 to vector<32x128xf32>
    %8 = arith.maximumf %6, %7 : vector<32x128xf32>
    %c0_7 = arith.constant 0 : index
    %c0_8 = arith.constant 0 : index
    %9 = vector.load %arg2[%c0_7, %c0_8] : memref<32x8xbf16, #tpu.memory_space<vmem>>, vector<32x8xbf16>
    %c1 = arith.constant 1 : index
    %c0_9 = arith.constant 0 : index
    %c0_10 = arith.constant 0 : index
    %10 = vector.load %arg1[%c1, %c0_9, %c0_10] : memref<4x8x128xbf16, #tpu.memory_space<vmem>>, vector<1x8x128xbf16>
    %11 = vector.shape_cast %10 : vector<1x8x128xbf16> to vector<8x128xbf16>
    %cst_11 = arith.constant dense<0.000000e+00> : vector<32x128xf32>
    %12 = tpu.matmul %9, %11, %cst_11 {dimension_numbers = #tpu.dot_dimension_numbers<[1], [0], [0], [1], [0, 0, 1, 1], [], []>} : vector<32x8xbf16>, vector<8x128xbf16>, vector<32x128xf32> -> vector<32x128xf32>
    %c0_12 = arith.constant 0 : index
    %c0_13 = arith.constant 0 : index
    %13 = vector.load %arg3[%c0_12, %c0_13] : memref<32x1xf32, #tpu.memory_space<vmem>>, vector<32x1xf32>
    %14 = vector.broadcast %13 : vector<32x1xf32> to vector<32x128xf32>
    %15 = arith.addf %12, %14 : vector<32x128xf32>
    %cst_14 = arith.constant 0.000000e+00 : f32
    %16 = vector.broadcast %cst_14 : f32 to vector<32x128xf32>
    %17 = arith.maximumf %15, %16 : vector<32x128xf32>
    %18 = arith.addf %8, %17 : vector<32x128xf32>
    %c0_15 = arith.constant 0 : index
    %c0_16 = arith.constant 0 : index
    %19 = vector.load %arg2[%c0_15, %c0_16] : memref<32x8xbf16, #tpu.memory_space<vmem>>, vector<32x8xbf16>
    %c2 = arith.constant 2 : index
    %c0_17 = arith.constant 0 : index
    %c0_18 = arith.constant 0 : index
    %20 = vector.load %arg1[%c2, %c0_17, %c0_18] : memref<4x8x128xbf16, #tpu.memory_space<vmem>>, vector<1x8x128xbf16>
    %21 = vector.shape_cast %20 : vector<1x8x128xbf16> to vector<8x128xbf16>
    %cst_19 = arith.constant dense<0.000000e+00> : vector<32x128xf32>
    %22 = tpu.matmul %19, %21, %cst_19 {dimension_numbers = #tpu.dot_dimension_numbers<[1], [0], [0], [1], [0, 0, 1, 1], [], []>} : vector<32x8xbf16>, vector<8x128xbf16>, vector<32x128xf32> -> vector<32x128xf32>
    %c0_20 = arith.constant 0 : index
    %c0_21 = arith.constant 0 : index
    %23 = vector.load %arg3[%c0_20, %c0_21] : memref<32x1xf32, #tpu.memory_space<vmem>>, vector<32x1xf32>
    %24 = vector.broadcast %23 : vector<32x1xf32> to vector<32x128xf32>
    %25 = arith.addf %22, %24 : vector<32x128xf32>
    %cst_22 = arith.constant 0.000000e+00 : f32
    %26 = vector.broadcast %cst_22 : f32 to vector<32x128xf32>
    %27 = arith.maximumf %25, %26 : vector<32x128xf32>
    %28 = arith.addf %18, %27 : vector<32x128xf32>
    %c0_23 = arith.constant 0 : index
    %c0_24 = arith.constant 0 : index
    %29 = vector.load %arg2[%c0_23, %c0_24] : memref<32x8xbf16, #tpu.memory_space<vmem>>, vector<32x8xbf16>
    %c3 = arith.constant 3 : index
    %c0_25 = arith.constant 0 : index
    %c0_26 = arith.constant 0 : index
    %30 = vector.load %arg1[%c3, %c0_25, %c0_26] : memref<4x8x128xbf16, #tpu.memory_space<vmem>>, vector<1x8x128xbf16>
    %31 = vector.shape_cast %30 : vector<1x8x128xbf16> to vector<8x128xbf16>
    %cst_27 = arith.constant dense<0.000000e+00> : vector<32x128xf32>
    %32 = tpu.matmul %29, %31, %cst_27 {dimension_numbers = #tpu.dot_dimension_numbers<[1], [0], [0], [1], [0, 0, 1, 1], [], []>} : vector<32x8xbf16>, vector<8x128xbf16>, vector<32x128xf32> -> vector<32x128xf32>
    %c0_28 = arith.constant 0 : index
    %c0_29 = arith.constant 0 : index
    %33 = vector.load %arg3[%c0_28, %c0_29] : memref<32x1xf32, #tpu.memory_space<vmem>>, vector<32x1xf32>
    %34 = vector.broadcast %33 : vector<32x1xf32> to vector<32x128xf32>
    %35 = arith.addf %32, %34 : vector<32x128xf32>
    %cst_30 = arith.constant 0.000000e+00 : f32
    %36 = vector.broadcast %cst_30 : f32 to vector<32x128xf32>
    %37 = arith.maximumf %35, %36 : vector<32x128xf32>
    %38 = arith.addf %28, %37 : vector<32x128xf32>
    %c0_31 = arith.constant 0 : index
    %c0_32 = arith.constant 0 : index
    %39 = vector.load %arg4[%c0_31, %c0_32] : memref<32x32xbf16, #tpu.memory_space<vmem>>, vector<32x32xbf16>
    %40 = arith.truncf %38 : vector<32x128xf32> to vector<32x128xbf16>
    %cst_33 = arith.constant dense<0.000000e+00> : vector<32x128xf32>
    %41 = tpu.matmul %39, %40, %cst_33 {dimension_numbers = #tpu.dot_dimension_numbers<[1], [0], [0], [1], [0, 0, 1, 1], [], []>} : vector<32x32xbf16>, vector<32x128xbf16>, vector<32x128xf32> -> vector<32x128xf32>
    %c0_34 = arith.constant 0 : index
    %c0_35 = arith.constant 0 : index
    %42 = vector.load %arg5[%c0_34, %c0_35] : memref<32x1xf32, #tpu.memory_space<vmem>>, vector<32x1xf32>
    %43 = vector.broadcast %42 : vector<32x1xf32> to vector<32x128xf32>
    %44 = arith.addf %41, %43 : vector<32x128xf32>
    %cst_36 = arith.constant 0.000000e+00 : f32
    %45 = vector.broadcast %cst_36 : f32 to vector<32x128xf32>
    %46 = arith.maximumf %44, %45 : vector<32x128xf32>
    %c0_37 = arith.constant 0 : index
    %c0_38 = arith.constant 0 : index
    %47 = vector.load %arg6[%c0_37, %c0_38] : memref<1x32xbf16, #tpu.memory_space<vmem>>, vector<1x32xbf16>
    %48 = arith.truncf %46 : vector<32x128xf32> to vector<32x128xbf16>
    %cst_39 = arith.constant dense<0.000000e+00> : vector<1x128xf32>
    %49 = tpu.matmul %47, %48, %cst_39 {dimension_numbers = #tpu.dot_dimension_numbers<[1], [0], [0], [1], [0, 0, 1, 1], [], []>} : vector<1x32xbf16>, vector<32x128xbf16>, vector<1x128xf32> -> vector<1x128xf32>
    %c0_40 = arith.constant 0 : index
    %c0_41 = arith.constant 0 : index
    %50 = memref.load %arg7[%c0_40, %c0_41] : memref<1x1xf32, #tpu.memory_space<smem>>
    %51 = vector.broadcast %50 : f32 to vector<1x128xf32>
    %52 = arith.addf %49, %51 : vector<1x128xf32>
    %c0_42 = arith.constant 0 : index
    %c0_43 = arith.constant 0 : index
    %53 = vector.load %arg8[%c0_42, %c0_43] : memref<1x128xf32, #tpu.memory_space<vmem>>, vector<1x128xf32>
    tpu.vector_store %arg8[%c0_42, %c0_43], %52 {strides = array<i32>} : memref<1x128xf32, #tpu.memory_space<vmem>>, vector<1x128xf32>,
    return
  }
  func.func @transform_0(%arg0: i32) -> (i32, i32, i32) {
    %c0_i32 = arith.constant 0 : i32
    %c0_i32_0 = arith.constant 0 : i32
    %c0_i32_1 = arith.constant 0 : i32
    return %c0_i32, %c0_i32_0, %arg0 : i32, i32, i32
  }
  func.func @transform_1(%arg0: i32) -> (i32, i32) {
    %c0_i32 = arith.constant 0 : i32
    %c0_i32_0 = arith.constant 0 : i32
    %c0_i32_1 = arith.constant 0 : i32
    return %c0_i32, %c0_i32_0 : i32, i32
  }
  func.func @transform_2(%arg0: i32) -> (i32, i32) {
    %c0_i32 = arith.constant 0 : i32
    %c0_i32_0 = arith.constant 0 : i32
    %c0_i32_1 = arith.constant 0 : i32
    return %c0_i32, %c0_i32_0 : i32, i32
  }
  func.func @transform_3(%arg0: i32) -> (i32, i32) {
    %c0_i32 = arith.constant 0 : i32
    %c0_i32_0 = arith.constant 0 : i32
    %c0_i32_1 = arith.constant 0 : i32
    return %c0_i32, %c0_i32_0 : i32, i32
  }
  func.func @transform_4(%arg0: i32) -> (i32, i32) {
    %c0_i32 = arith.constant 0 : i32
    %c0_i32_0 = arith.constant 0 : i32
    %c0_i32_1 = arith.constant 0 : i32
    return %c0_i32, %c0_i32_0 : i32, i32
  }
  func.func @transform_5(%arg0: i32) -> (i32, i32) {
    %c0_i32 = arith.constant 0 : i32
    %c0_i32_0 = arith.constant 0 : i32
    %c0_i32_1 = arith.constant 0 : i32
    return %c0_i32, %c0_i32_0 : i32, i32
  }
  func.func @transform_6(%arg0: i32) -> (i32, i32) {
    %c0_i32 = arith.constant 0 : i32
    %c0_i32_0 = arith.constant 0 : i32
    %c0_i32_1 = arith.constant 0 : i32
    return %c0_i32, %c0_i32_0 : i32, i32
  }
  func.func @transform_7(%arg0: i32) -> (i32, i32) {
    %c0_i32 = arith.constant 0 : i32
    %c0_i32_0 = arith.constant 0 : i32
    return %arg0, %c0_i32 : i32, i32
  }
}

</mosaic_0001>

<llo_original>
// kernel: deepset2_forward.1
$region0: #{deepset2_forward.1}
  #allocation0 [shape = 'u32[]', space=smem, size = 0x4, offset = 0x4, fixed_abs, tag = 'smem constant byte address 0x4 - core index']
  #allocation1 [shape = 'u32[144,128]{1,0:T(1,128)}', space=vmem, size = 0x12000, scoped, tag = 'internal scratch']
  #allocation2 [shape = 'f32[1,1]{1,0:T(1,128)S(6)}', space=smem, size = 0x200, scoped, tag = 'scoped memory for deepset2_forward.1']
  %s0 = inlined_call_operand.vmem [shape: bf16[4,8,128], index: 0, kind: input, shape index: {}]
  %s1 = inlined_call_operand.vmem [shape: bf16[32,8], index: 1, kind: input, shape index: {}]
  %s2 = inlined_call_operand.vmem [shape: f32[32,1], index: 2, kind: input, shape index: {}]
  %s3 = inlined_call_operand.vmem [shape: bf16[32,32], index: 3, kind: input, shape index: {}]
  %s4 = inlined_call_operand.vmem [shape: f32[32,1], index: 4, kind: input, shape index: {}]
  %s5 = inlined_call_operand.vmem [shape: bf16[1,32], index: 5, kind: input, shape index: {}]
  %s6 = inlined_call_operand.<no memory space> [shape: f32[1,1], index: 6, kind: input, shape index: {}]
  %s7 = inlined_call_operand.vmem [shape: f32[1,128], index: 7, kind: output, shape index: {}]
  %s8 = sld [smem:[#allocation0]]
  $region38: #{deepset2_forward.1} parent=0
    _
  %s10 = ssub.s32 1, %s8
  %s11 = scalar_select 0, %s10, %s8
  %12 = sst [smem:[#allocation2]] %s6
  // Predicated region
  $region2: #{deepset2_forward.1} parent=0 // pred_check
    _
  $region3: #{deepset2_forward.1} parent=0 // pred_check_branch
    %14 = sbr.rel (0) target = $region5
  $region4: #{deepset2_forward.1} parent=0 // pred_region
    _
  $region5: #{deepset2_forward.1} parent=0 // pred_fallthru
    _
  // Predicated region
  $region6: #{deepset2_forward.1} parent=0 // pred_check
    _
  $region7: #{deepset2_forward.1} parent=0 // pred_check_branch
    %16 = sbr.rel (0) target = $region9
  $region8: #{deepset2_forward.1} parent=0 // pred_region
    _
  $region9: #{deepset2_forward.1} parent=0 // pred_fallthru
    _
  // Predicated region
  $region10: #{deepset2_forward.1} parent=0 // pred_check
    _
  $region11: #{deepset2_forward.1} parent=0 // pred_check_branch
    %18 = sbr.rel (0) target = $region13
  $region12: #{deepset2_forward.1} parent=0 // pred_region
    _
  $region13: #{deepset2_forward.1} parent=0 // pred_fallthru
    _
  // Predicated region
  $region14: #{deepset2_forward.1} parent=0 // pred_check
    _
  $region15: #{deepset2_forward.1} parent=0 // pred_check_branch
    %20 = sbr.rel (0) target = $region17
  $region16: #{deepset2_forward.1} parent=0 // pred_region
    _
  $region17: #{deepset2_forward.1} parent=0 // pred_fallthru
    _
  // Predicated region
  $region18: #{deepset2_forward.1} parent=0 // pred_check
    _
  $region19: #{deepset2_forward.1} parent=0 // pred_check_branch
    %22 = sbr.rel (0) target = $region21
  $region20: #{deepset2_forward.1} parent=0 // pred_region
    _
  $region21: #{deepset2_forward.1} parent=0 // pred_fallthru
    _
  // Predicated region
  $region22: #{deepset2_forward.1} parent=0 // pred_check
    _
  $region23: #{deepset2_forward.1} parent=0 // pred_check_branch
    %24 = sbr.rel (0) target = $region25
  $region24: #{deepset2_forward.1} parent=0 // pred_region
    _
  $region25: #{deepset2_forward.1} parent=0 // pred_fallthru
    _
  // Predicated region
  $region26: #{deepset2_forward.1} parent=0 // pred_check
    _
  $region27: #{deepset2_forward.1} parent=0 // pred_check_branch
    %26 = sbr.rel (0) target = $region29
  $region28: #{deepset2_forward.1} parent=0 // pred_region
    _
  $region29: #{deepset2_forward.1} parent=0 // pred_fallthru
    _
  %v28 = vld [vmem:[%s1] sm:$0xf]
  %v29 = vld [vmem:[%s1 + $0x4] sm:$0xf]
  %v30 = vld [vmem:[%s1 + $0x8] sm:$0xf]
  %v31 = vld [vmem:[%s1 + $0xc] sm:$0xf]
  %v32 = vld [vmem:[%s0] sm:$0xf]
  %v33 = vld [vmem:[%s2] sm:$0xff]
  %v34 = vld [vmem:[%s2 + $0x8] sm:$0xff]
  %v35 = vld [vmem:[%s2 + $0x10] sm:$0xff]
  %v36 = vld [vmem:[%s2 + $0x18] sm:$0xff]
  %38 = vset.pattern.permute.xlu0 0
  %39 = vperm.xlu0 %38, %v33
  %v40 = vpop.permute.xlu0 %39
  %43 = vset.pattern.permute.xlu0 0
  %44 = vperm.xlu0 %43, %v34
  %v45 = vpop.permute.xlu0 %44
  %48 = vset.pattern.permute.xlu0 0
  %49 = vperm.xlu0 %48, %v35
  %v50 = vpop.permute.xlu0 %49
  %53 = vset.pattern.permute.xlu0 0
  %54 = vperm.xlu0 %53, %v36
  %v55 = vpop.permute.xlu0 %54
  %v61 = vunpack.c.l.b16 %v28
  %v62 = vunpack.c.l.b16 %v29
  %v63 = vunpack.c.l.b16 %v30
  %v64 = vunpack.c.l.b16 %v31
  %v65 = vpack.c.b16 %v62, %v61
  %v66 = vpack.c.b16 %v64, %v63
  %vm67 = vcmask 64512
  %v69 = vsel %vm67, %v65, 0
  %v72 = vsel %vm67, %v66, 0
  %vm74 = vcmask 1043456
  %v76 = vsel %vm74, %v32, 0
  %78 = vmatprep.subr.bf16.mxu0 0
  %79 = vmatpush1.bf16.msra.mxu0 %v76
  %80 = vmatprep.subr.bf16.mxu0 0
  %81 = vmatpush1.bf16.msra.mxu0 0
  %82 = vmatprep.subr.bf16.mxu0 0
  %83 = vmatpush1.bf16.msra.mxu0 0
  %84 = vmatprep.subr.bf16.mxu0 0
  %85 = vmatpush1.bf16.msra.mxu0 0
  %86 = vmatprep.subr.bf16.mxu0 0
  %87 = vmatpush1.bf16.msra.mxu0 0
  %88 = vmatprep.subr.bf16.mxu0 0
  %89 = vmatpush1.bf16.msra.mxu0 0
  %90 = vmatprep.subr.bf16.mxu0 0
  %91 = vmatpush1.bf16.msra.mxu0 0
  %92 = vmatprep.subr.bf16.mxu0 0
  %93 = vmatpush1.bf16.msra.mxu0 0
  %94 = vmatprep.subr.bf16.mxu0 0
  %95 = vmatpush1.bf16.msra.mxu0 0
  %96 = vmatprep.subr.bf16.mxu0 0
  %97 = vmatpush1.bf16.msra.mxu0 0
  %98 = vmatprep.subr.bf16.mxu0 0
  %99 = vmatpush1.bf16.msra.mxu0 0
  %100 = vmatprep.subr.bf16.mxu0 0
  %101 = vmatpush1.bf16.msra.mxu0 0
  %102 = vmatprep.subr.bf16.mxu0 0
  %103 = vmatpush1.bf16.msra.mxu0 0
  %104 = vmatprep.subr.bf16.mxu0 0
  %105 = vmatpush1.bf16.msra.mxu0 0
  %106 = vmatprep.subr.bf16.mxu0 0
  %107 = vmatpush1.bf16.msra.mxu0 0
  %108 = vmatprep.subr.bf16.mxu0 0
  %109 = vmatpush1.bf16.msra.mxu0 0
  %110 = vmatprep.mubr.bf16.mxu0 0
  %111 = vmatmul.mubr.bf16.gmra.mrb[0].mxu0 %v69
  %v112 = vpop.f32.mrb[0].mxu0
  %v113 = vadd.f32 %v40, %v112
  %v114 = vpop.f32.mrb[0].mxu0
  %v115 = vpop.f32.mrb[0].mxu0
  %v116 = vadd.f32 %v45, %v115
  %v117 = vpop.f32.mrb[0].mxu0
  %118 = vmatprep.mubr.bf16.mxu0 0
  %119 = vmatmul.mubr.bf16.gmra.mrb[0].mxu0 %v72
  %v120 = vpop.f32.mrb[0].mxu0
  %v121 = vadd.f32 %v50, %v120
  %v122 = vpop.f32.mrb[0].mxu0
  %v123 = vpop.f32.mrb[0].mxu0
  %v124 = vadd.f32 %v55, %v123
  %v125 = vpop.f32.mrb[0].mxu0
  %126 = vdwg.mxu0
  %v127 = vmax.f32 %v113, 0.0
  %v128 = vmax.f32 %v116, 0.0
  %v129 = vmax.f32 %v121, 0.0
  %v130 = vmax.f32 %v124, 0.0
  %s131 = scalar_lea.vmem %s0, 4
  %v132 = vld [vmem:[%s131] sm:$0xf]
  %v134 = vsel %vm74, %v132, 0
  %136 = vmatprep.subr.bf16.mxu0 0
  %137 = vmatpush1.bf16.msra.mxu0 %v134
  %138 = vmatprep.subr.bf16.mxu0 0
  %139 = vmatpush1.bf16.msra.mxu0 0
  %140 = vmatprep.subr.bf16.mxu0 0
  %141 = vmatpush1.bf16.msra.mxu0 0
  %142 = vmatprep.subr.bf16.mxu0 0
  %143 = vmatpush1.bf16.msra.mxu0 0
  %144 = vmatprep.subr.bf16.mxu0 0
  %145 = vmatpush1.bf16.msra.mxu0 0
  %146 = vmatprep.subr.bf16.mxu0 0
  %147 = vmatpush1.bf16.msra.mxu0 0
  %148 = vmatprep.subr.bf16.mxu0 0
  %149 = vmatpush1.bf16.msra.mxu0 0
  %150 = vmatprep.subr.bf16.mxu0 0
  %151 = vmatpush1.bf16.msra.mxu0 0
  %152 = vmatprep.subr.bf16.mxu0 0
  %153 = vmatpush1.bf16.msra.mxu0 0
  %154 = vmatprep.subr.bf16.mxu0 0
  %155 = vmatpush1.bf16.msra.mxu0 0
  %156 = vmatprep.subr.bf16.mxu0 0
  %157 = vmatpush1.bf16.msra.mxu0 0
  %158 = vmatprep.subr.bf16.mxu0 0
  %159 = vmatpush1.bf16.msra.mxu0 0
  %160 = vmatprep.subr.bf16.mxu0 0
  %161 = vmatpush1.bf16.msra.mxu0 0
  %162 = vmatprep.subr.bf16.mxu0 0
  %163 = vmatpush1.bf16.msra.mxu0 0
  %164 = vmatprep.subr.bf16.mxu0 0
  %165 = vmatpush1.bf16.msra.mxu0 0
  %166 = vmatprep.subr.bf16.mxu0 0
  %167 = vmatpush1.bf16.msra.mxu0 0
  %168 = vmatprep.mubr.bf16.mxu0 0
  %169 = vmatmul.mubr.bf16.gmra.mrb[0].mxu0 %v69
  %v170 = vpop.f32.mrb[0].mxu0
  %v171 = vadd.f32 %v40, %v170
  %v172 = vpop.f32.mrb[0].mxu0
  %v173 = vpop.f32.mrb[0].mxu0
  %v174 = vadd.f32 %v45, %v173
  %v175 = vpop.f32.mrb[0].mxu0
  %176 = vmatprep.mubr.bf16.mxu0 0
  %177 = vmatmul.mubr.bf16.gmra.mrb[0].mxu0 %v72
  %v178 = vpop.f32.mrb[0].mxu0
  %v179 = vadd.f32 %v50, %v178
  %v180 = vpop.f32.mrb[0].mxu0
  %v181 = vpop.f32.mrb[0].mxu0
  %v182 = vadd.f32 %v55, %v181
  %v183 = vpop.f32.mrb[0].mxu0
  %184 = vdwg.mxu0
  %v185 = vmax.f32 %v171, 0.0
  %v186 = vmax.f32 %v174, 0.0
  %v187 = vmax.f32 %v179, 0.0
  %v188 = vmax.f32 %v182, 0.0
  %v189 = vadd.f32 %v127, %v185
  %v190 = vadd.f32 %v128, %v186
  %v191 = vadd.f32 %v129, %v187
  %v192 = vadd.f32 %v130, %v188
  %s193 = scalar_lea.vmem %s0, 8
  %v194 = vld [vmem:[%s193] sm:$0xf]
  %v196 = vsel %vm74, %v194, 0
  %198 = vmatprep.subr.bf16.mxu0 0
  %199 = vmatpush1.bf16.msra.mxu0 %v196
  %200 = vmatprep.subr.bf16.mxu0 0
  %201 = vmatpush1.bf16.msra.mxu0 0
  %202 = vmatprep.subr.bf16.mxu0 0
  %203 = vmatpush1.bf16.msra.mxu0 0
  %204 = vmatprep.subr.bf16.mxu0 0
  %205 = vmatpush1.bf16.msra.mxu0 0
  %206 = vmatprep.subr.bf16.mxu0 0
  %207 = vmatpush1.bf16.msra.mxu0 0
  %208 = vmatprep.subr.bf16.mxu0 0
  %209 = vmatpush1.bf16.msra.mxu0 0
  %210 = vmatprep.subr.bf16.mxu0 0
  %211 = vmatpush1.bf16.msra.mxu0 0
  %212 = vmatprep.subr.bf16.mxu0 0
  %213 = vmatpush1.bf16.msra.mxu0 0
  %214 = vmatprep.subr.bf16.mxu0 0
  %215 = vmatpush1.bf16.msra.mxu0 0
  %216 = vmatprep.subr.bf16.mxu0 0
  %217 = vmatpush1.bf16.msra.mxu0 0
  %218 = vmatprep.subr.bf16.mxu0 0
  %219 = vmatpush1.bf16.msra.mxu0 0
  %220 = vmatprep.subr.bf16.mxu0 0
  %221 = vmatpush1.bf16.msra.mxu0 0
  %222 = vmatprep.subr.bf16.mxu0 0
  %223 = vmatpush1.bf16.msra.mxu0 0
  %224 = vmatprep.subr.bf16.mxu0 0
  %225 = vmatpush1.bf16.msra.mxu0 0
  %226 = vmatprep.subr.bf16.mxu0 0
  %227 = vmatpush1.bf16.msra.mxu0 0
  %228 = vmatprep.subr.bf16.mxu0 0
  %229 = vmatpush1.bf16.msra.mxu0 0
  %230 = vmatprep.mubr.bf16.mxu0 0
  %231 = vmatmul.mubr.bf16.gmra.mrb[0].mxu0 %v69
  %v232 = vpop.f32.mrb[0].mxu0
  %v233 = vadd.f32 %v40, %v232
  %v234 = vpop.f32.mrb[0].mxu0
  %v235 = vpop.f32.mrb[0].mxu0
  %v236 = vadd.f32 %v45, %v235
  %v237 = vpop.f32.mrb[0].mxu0
  %238 = vmatprep.mubr.bf16.mxu0 0
  %239 = vmatmul.mubr.bf16.gmra.mrb[0].mxu0 %v72
  %v240 = vpop.f32.mrb[0].mxu0
  %v241 = vadd.f32 %v50, %v240
  %v242 = vpop.f32.mrb[0].mxu0
  %v243 = vpop.f32.mrb[0].mxu0
  %v244 = vadd.f32 %v55, %v243
  %v245 = vpop.f32.mrb[0].mxu0
  %246 = vdwg.mxu0
  %v247 = vmax.f32 %v233, 0.0
  %v248 = vmax.f32 %v236, 0.0
  %v249 = vmax.f32 %v241, 0.0
  %v250 = vmax.f32 %v244, 0.0
  %v251 = vadd.f32 %v189, %v247
  %v252 = vadd.f32 %v190, %v248
  %v253 = vadd.f32 %v191, %v249
  %v254 = vadd.f32 %v192, %v250
  %s255 = scalar_lea.vmem %s0, 12
  %v256 = vld [vmem:[%s255] sm:$0xf]
  %v258 = vsel %vm74, %v256, 0
  %260 = vmatprep.subr.bf16.mxu0 0
  %261 = vmatpush1.bf16.msra.mxu0 %v258
  %262 = vmatprep.subr.bf16.mxu0 0
  %263 = vmatpush1.bf16.msra.mxu0 0
  %264 = vmatprep.subr.bf16.mxu0 0
  %265 = vmatpush1.bf16.msra.mxu0 0
  %266 = vmatprep.subr.bf16.mxu0 0
  %267 = vmatpush1.bf16.msra.mxu0 0
  %268 = vmatprep.subr.bf16.mxu0 0
  %269 = vmatpush1.bf16.msra.mxu0 0
  %270 = vmatprep.subr.bf16.mxu0 0
  %271 = vmatpush1.bf16.msra.mxu0 0
  %272 = vmatprep.subr.bf16.mxu0 0
  %273 = vmatpush1.bf16.msra.mxu0 0
  %274 = vmatprep.subr.bf16.mxu0 0
  %275 = vmatpush1.bf16.msra.mxu0 0
  %276 = vmatprep.subr.bf16.mxu0 0
  %277 = vmatpush1.bf16.msra.mxu0 0
  %278 = vmatprep.subr.bf16.mxu0 0
  %279 = vmatpush1.bf16.msra.mxu0 0
  %280 = vmatprep.subr.bf16.mxu0 0
  %281 = vmatpush1.bf16.msra.mxu0 0
  %282 = vmatprep.subr.bf16.mxu0 0
  %283 = vmatpush1.bf16.msra.mxu0 0
  %284 = vmatprep.subr.bf16.mxu0 0
  %285 = vmatpush1.bf16.msra.mxu0 0
  %286 = vmatprep.subr.bf16.mxu0 0
  %287 = vmatpush1.bf16.msra.mxu0 0
  %288 = vmatprep.subr.bf16.mxu0 0
  %289 = vmatpush1.bf16.msra.mxu0 0
  %290 = vmatprep.subr.bf16.mxu0 0
  %291 = vmatpush1.bf16.msra.mxu0 0
  %292 = vmatprep.mubr.bf16.mxu0 0
  %293 = vmatmul.mubr.bf16.gmra.mrb[0].mxu0 %v69
  %v294 = vpop.f32.mrb[0].mxu0
  %v295 = vadd.f32 %v40, %v294
  %v296 = vpop.f32.mrb[0].mxu0
  %v297 = vpop.f32.mrb[0].mxu0
  %v298 = vadd.f32 %v45, %v297
  %v299 = vpop.f32.mrb[0].mxu0
  %300 = vmatprep.mubr.bf16.mxu0 0
  %301 = vmatmul.mubr.bf16.gmra.mrb[0].mxu0 %v72
  %v302 = vpop.f32.mrb[0].mxu0
  %v303 = vadd.f32 %v50, %v302
  %v304 = vpop.f32.mrb[0].mxu0
  %v305 = vpop.f32.mrb[0].mxu0
  %v306 = vadd.f32 %v55, %v305
  %v307 = vpop.f32.mrb[0].mxu0
  %308 = vdwg.mxu0
  %v309 = vmax.f32 %v295, 0.0
  %v310 = vmax.f32 %v298, 0.0
  %v311 = vmax.f32 %v303, 0.0
  %v312 = vmax.f32 %v306, 0.0
  %v313 = vadd.f32 %v251, %v309
  %v314 = vadd.f32 %v252, %v310
  %v315 = vadd.f32 %v253, %v311
  %v316 = vadd.f32 %v254, %v312
  %v317 = vld [vmem:[%s3] sm:$0xf]
  %v318 = vld [vmem:[%s3 + $0x4] sm:$0xf]
  %v319 = vld [vmem:[%s3 + $0x8] sm:$0xf]
  %v320 = vld [vmem:[%s3 + $0xc] sm:$0xf]
  %v321 = vpack.c.bf16 %v314, %v313
  %v322 = vpack.c.bf16 %v316, %v315
  %v323 = vld [vmem:[%s4] sm:$0xff]
  %v324 = vld [vmem:[%s4 + $0x8] sm:$0xff]
  %v325 = vld [vmem:[%s4 + $0x10] sm:$0xff]
  %v326 = vld [vmem:[%s4 + $0x18] sm:$0xff]
  %328 = vset.pattern.permute.xlu0 0
  %329 = vperm.xlu0 %328, %v323
  %v330 = vpop.permute.xlu0 %329
  %333 = vset.pattern.permute.xlu0 0
  %334 = vperm.xlu0 %333, %v324
  %v335 = vpop.permute.xlu0 %334
  %338 = vset.pattern.permute.xlu0 0
  %339 = vperm.xlu0 %338, %v325
  %v340 = vpop.permute.xlu0 %339
  %343 = vset.pattern.permute.xlu0 0
  %344 = vperm.xlu0 %343, %v326
  %v345 = vpop.permute.xlu0 %344
  %v351 = vunpack.c.l.b16 %v317
  %v352 = vunpack.c.l.b16 %v318
  %v353 = vunpack.c.l.b16 %v319
  %v354 = vunpack.c.l.b16 %v320
  %v355 = vpack.c.b16 %v352, %v351
  %v356 = vpack.c.b16 %v354, %v353
  %vm357 = vcmask 261120
  %v359 = vsel %vm357, %v355, 0
  %v362 = vsel %vm357, %v356, 0
  %364 = vmatprep.subr.bf16.mxu0 0
  %365 = vmatpush1.bf16.msra.mxu0 %v321
  %366 = vmatprep.subr.bf16.mxu0 0
  %367 = vmatpush1.bf16.msra.mxu0 %v322
  %368 = vmatprep.subr.bf16.mxu0 0
  %369 = vmatpush1.bf16.msra.mxu0 0
  %370 = vmatprep.subr.bf16.mxu0 0
  %371 = vmatpush1.bf16.msra.mxu0 0
  %372 = vmatprep.subr.bf16.mxu0 0
  %373 = vmatpush1.bf16.msra.mxu0 0
  %374 = vmatprep.subr.bf16.mxu0 0
  %375 = vmatpush1.bf16.msra.mxu0 0
  %376 = vmatprep.subr.bf16.mxu0 0
  %377 = vmatpush1.bf16.msra.mxu0 0
  %378 = vmatprep.subr.bf16.mxu0 0
  %379 = vmatpush1.bf16.msra.mxu0 0
  %380 = vmatprep.subr.bf16.mxu0 0
  %381 = vmatpush1.bf16.msra.mxu0 0
  %382 = vmatprep.subr.bf16.mxu0 0
  %383 = vmatpush1.bf16.msra.mxu0 0
  %384 = vmatprep.subr.bf16.mxu0 0
  %385 = vmatpush1.bf16.msra.mxu0 0
  %386 = vmatprep.subr.bf16.mxu0 0
  %387 = vmatpush1.bf16.msra.mxu0 0
  %388 = vmatprep.subr.bf16.mxu0 0
  %389 = vmatpush1.bf16.msra.mxu0 0
  %390 = vmatprep.subr.bf16.mxu0 0
  %391 = vmatpush1.bf16.msra.mxu0 0
  %392 = vmatprep.subr.bf16.mxu0 0
  %393 = vmatpush1.bf16.msra.mxu0 0
  %394 = vmatprep.subr.bf16.mxu0 0
  %395 = vmatpush1.bf16.msra.mxu0 0
  %396 = vmatprep.mubr.bf16.mxu0 0
  %397 = vmatmul.mubr.bf16.gmra.mrb[0].mxu0 %v359
  %v398 = vpop.f32.mrb[0].mxu0
  %v399 = vadd.f32 %v330, %v398
  %v400 = vpop.f32.mrb[0].mxu0
  %v401 = vpop.f32.mrb[0].mxu0
  %v402 = vadd.f32 %v335, %v401
  %v403 = vpop.f32.mrb[0].mxu0
  %404 = vmatprep.mubr.bf16.mxu0 0
  %405 = vmatmul.mubr.bf16.gmra.mrb[0].mxu0 %v362
  %v406 = vpop.f32.mrb[0].mxu0
  %v407 = vadd.f32 %v340, %v406
  %v408 = vpop.f32.mrb[0].mxu0
  %v409 = vpop.f32.mrb[0].mxu0
  %v410 = vadd.f32 %v345, %v409
  %v411 = vpop.f32.mrb[0].mxu0
  %412 = vdwg.mxu0
  %v413 = vmax.f32 %v399, 0.0
  %v414 = vmax.f32 %v402, 0.0
  %v415 = vmax.f32 %v407, 0.0
  %v416 = vmax.f32 %v410, 0.0
  %v417 = vld [vmem:[%s5] sm:$0x1]
  %v418 = vpack.c.bf16 %v414, %v413
  %v419 = vpack.c.bf16 %v416, %v415
  %s420 = sld [smem:[#allocation2]]
  %v421 = vstv %s420
  %v423 = vsel %vm357, %v417, 0
  %425 = vmatprep.subr.bf16.mxu0 0
  %426 = vmatpush1.bf16.msra.mxu0 %v418
  %427 = vmatprep.subr.bf16.mxu0 0
  %428 = vmatpush1.bf16.msra.mxu0 %v419
  %429 = vmatprep.subr.bf16.mxu0 0
  %430 = vmatpush1.bf16.msra.mxu0 0
  %431 = vmatprep.subr.bf16.mxu0 0
  %432 = vmatpush1.bf16.msra.mxu0 0
  %433 = vmatprep.subr.bf16.mxu0 0
  %434 = vmatpush1.bf16.msra.mxu0 0
  %435 = vmatprep.subr.bf16.mxu0 0
  %436 = vmatpush1.bf16.msra.mxu0 0
  %437 = vmatprep.subr.bf16.mxu0 0
  %438 = vmatpush1.bf16.msra.mxu0 0
  %439 = vmatprep.subr.bf16.mxu0 0
  %440 = vmatpush1.bf16.msra.mxu0 0
  %441 = vmatprep.subr.bf16.mxu0 0
  %442 = vmatpush1.bf16.msra.mxu0 0
  %443 = vmatprep.subr.bf16.mxu0 0
  %444 = vmatpush1.bf16.msra.mxu0 0
  %445 = vmatprep.subr.bf16.mxu0 0
  %446 = vmatpush1.bf16.msra.mxu0 0
  %447 = vmatprep.subr.bf16.mxu0 0
  %448 = vmatpush1.bf16.msra.mxu0 0
  %449 = vmatprep.subr.bf16.mxu0 0
  %450 = vmatpush1.bf16.msra.mxu0 0
  %451 = vmatprep.subr.bf16.mxu0 0
  %452 = vmatpush1.bf16.msra.mxu0 0
  %453 = vmatprep.subr.bf16.mxu0 0
  %454 = vmatpush1.bf16.msra.mxu0 0
  %455 = vmatprep.subr.bf16.mxu0 0
  %456 = vmatpush1.bf16.msra.mxu0 0
  %457 = vmatprep.mubr.bf16.mxu0 0
  %458 = vmatmul.mubr.bf16.gmra.mrb[0].mxu0 %v423
  %v459 = vpop.f32.mrb[0].mxu0
  %v460 = vadd.f32 %v421, %v459
  %v461 = vpop.f32.mrb[0].mxu0
  %v462 = vpop.f32.mrb[0].mxu0
  %v463 = vpop.f32.mrb[0].mxu0
  %464 = vdwg.mxu0
  %465 = vst [vmem:[%s7] sm:$0x1] %v460
  // Predicated region
  $region30: #{deepset2_forward.1} parent=0 // pred_check
    _
  $region31: #{deepset2_forward.1} parent=0 // pred_check_branch
    %467 = sbr.rel (0) target = $region33
  $region32: #{deepset2_forward.1} parent=0 // pred_region
    _
  $region33: #{deepset2_forward.1} parent=0 // pred_fallthru
    _
  // Predicated region
  $region34: #{deepset2_forward.1} parent=0 // pred_check
    _
  $region35: #{deepset2_forward.1} parent=0 // pred_check_branch
    %469 = sbr.rel (0) target = $region37
  $region36: #{deepset2_forward.1} parent=0 // pred_region
    _
  $region37: #{deepset2_forward.1} parent=0 // pred_fallthru
    _

</llo_original>
